<compile_context>
chip_gen: v7x
topology: tpu7x:2x2x1
jax: 0.10.0
libtpu: 0.0.40
codegen_flags: <defaults>
</compile_context>

<pallas_src>
import functools

import jax
import jax.numpy as jnp
from jax.experimental import pallas as pl
from jax.experimental.pallas import tpu as pltpu


def _round_up(x, m):
    return m * ((x + m - 1) // m)


def _cdiv(a, b):
    return (a + b - 1) // b


def _num_tensorcores():
    """2 for megacore / dual-TC parts (v4, v5p, v7x); 1 for v5e / v6e."""
    try:
        kind = jax.devices()[0].device_kind.lower()
    except Exception:
        return 1
    if "lite" in kind or "v5e" in kind or "v6" in kind:
        return 1
    for tag in ("v7", "v5p", "v4"):
        if tag in kind:
            return 2
    return 1


def _vmem_capacity_bytes():
    try:
        return int(pltpu.get_tpu_info().vmem_capacity_bytes)
    except Exception:
        return 128 << 20  # v5e/v6e default; conservative elsewhere


# --------------------------------------------------------------------------- #
# Kernels
# --------------------------------------------------------------------------- #
def _gate(z1, z2, approx):
    """silu(z1) * z2 in f32; keep the divide on the EUP when approx=True."""
    if approx:
        sig = pl.reciprocal(1.0 + jnp.exp(-z1), approx=True)
    else:
        sig = jax.nn.sigmoid(z1)
    return z1 * sig * z2


def _gated_mlp_kernel_resident(z_ref, w12_ref, w3_ref, o_ref, *, inner_tile, approx):
    # Weights fully VMEM-resident (n_kt == 1): no accumulator, direct store.
    # z_ref: (tm, H); w12_ref: (H, 2*ti); w3_ref: (ti, H); o_ref: (tm, H)
    z = z_ref[...].astype(w12_ref.dtype)  # no-op when activations already bf16
    zz = jnp.dot(z, w12_ref[...], preferred_element_type=jnp.float32)  # (tm, 2*ti)
    h = _gate(zz[:, :inner_tile], zz[:, inner_tile:], approx)          # f32 gate
    o_ref[...] = jnp.dot(h.astype(w3_ref.dtype), w3_ref[...],
                         preferred_element_type=jnp.float32).astype(o_ref.dtype)


def _gated_mlp_kernel_streamed(z_ref, w12_ref, w3_ref, o_ref, acc_ref,
                               *, inner_tile, approx):
    # Weights streamed over an inner-dimension grid axis (k); f32 accumulator.
    k = pl.program_id(1)

    @pl.when(k == 0)
    def _init():
        acc_ref[...] = jnp.zeros_like(acc_ref)

    z = z_ref[...].astype(w12_ref.dtype)
    zz = jnp.dot(z, w12_ref[...], preferred_element_type=jnp.float32)
    h = _gate(zz[:, :inner_tile], zz[:, inner_tile:], approx)
    acc_ref[...] += jnp.dot(h.astype(w3_ref.dtype), w3_ref[...],
                            preferred_element_type=jnp.float32)

    @pl.when(k == pl.num_programs(1) - 1)
    def _store():
        o_ref[...] = acc_ref[...].astype(o_ref.dtype)


# --------------------------------------------------------------------------- #
# Weight preparation (ONCE at parameter-setup time)
# --------------------------------------------------------------------------- #
def _choose_inner_tile(inner, hidden, wbytes, budget_bytes, tm):
    """Largest inner tile that fits the per-generation VMEM budget, counting the
    double-buffered weight tiles, the f32 zz/h intermediates, and the
    double-buffered activation tiles."""
    def need(ti):
        w = 2 * (2 * ti + ti) * hidden * wbytes      # w12 + w3 tiles, 2 buffers
        inter = 3 * tm * ti * 4                      # zz (tm,2ti) + h (tm,ti), f32
        act = 4 * tm * hidden * max(wbytes, 2)       # z + out tiles, 2 buffers
        return w + inter + act

    for ti in (inner, 8192, 4096, 2048, 1024, 512, 256, 128):
        if ti <= inner and inner % ti == 0 and need(ti) <= budget_bytes:
            return ti
    for ti in (256, 128):                            # last resort; may exceed budget
        if inner % ti == 0:
            return ti
    return inner


def prepare_weights(w1, w2, w3, *, compute_dtype=jnp.bfloat16,
                    vmem_budget_bytes=40 << 20, assumed_row_tile=1024,
                    max_inner_tile=None):
    """PyTorch-layout weights -> kernel layout.

    w1, w2: (inner, hidden); w3: (hidden, inner).
    Returns:
      w12: (n_kt, hidden, 2*ti)  per-inner-tile fused [W1.T | W2.T]
      w3t: (inner, hidden)       W3.T
    """
    inner, hidden = w1.shape
    assert w2.shape == (inner, hidden) and w3.shape == (hidden, inner)
    wbytes = jnp.dtype(compute_dtype).itemsize
    ti = _choose_inner_tile(inner, hidden, wbytes, vmem_budget_bytes, assumed_row_tile)
    if max_inner_tile is not None:
        ti = min(ti, max_inner_tile)
    assert inner % ti == 0
    n_kt = inner // ti

    w1t = w1.T.astype(compute_dtype)          # (H, I)
    w2t = w2.T.astype(compute_dtype)          # (H, I)
    w3t = w3.T.astype(compute_dtype)          # (I, H)
    w12 = jnp.concatenate(
        [w1t.reshape(hidden, n_kt, ti).transpose(1, 0, 2),
         w2t.reshape(hidden, n_kt, ti).transpose(1, 0, 2)],
        axis=-1)                               # (n_kt, H, 2*ti)
    return w12, w3t


# --------------------------------------------------------------------------- #
# Wrapper
# --------------------------------------------------------------------------- #
def parallel_gated_mlp(z, w12, w3t, *, tm=1024):
    """z: (..., hidden); w12/w3t from prepare_weights. Output dtype == z dtype."""
    orig_shape = z.shape
    hidden = orig_shape[-1]
    n_kt, h_w, two_ti = w12.shape
    assert h_w == hidden
    ti = two_ti // 2
    inner = n_kt * ti
    assert w3t.shape == (inner, hidden)

    zf = z.reshape(-1, hidden)
    n = zf.shape[0]

    z_bytes = jnp.dtype(zf.dtype).itemsize
    w_bytes = jnp.dtype(w12.dtype).itemsize

    # Row tile: multiple of 16 for 2-byte activations (bf16 min tile = (16,128)),
    # else 8. No host-side padding; Pallas masks the ragged last block.
    row_align = 16 if z_bytes == 2 else 8
    tile_m = 2048 if n >= 4096 else tm
    tile_m = min(tile_m, _round_up(n, row_align))

    # Dual-TC parts: balance row tiles so both cores get near-equal work.
    n_cores = _num_tensorcores()
    if n_cores > 1 and n >= 16 * row_align:
        n_tiles = n_cores * _cdiv(_cdiv(n, tile_m), n_cores)
        tile_m = _round_up(_cdiv(n, n_tiles), row_align)

    grid_rows = _cdiv(n, tile_m)
    approx = jnp.dtype(w12.dtype) != jnp.dtype(jnp.float32)

    weight_bytes = (w12.size + w3t.size) * w_bytes
    cost = pl.CostEstimate(
        flops=int(6 * n * hidden * inner),                # 3 matmuls, 2*M*K*N each
        transcendentals=int(n * inner),                   # exp inside SiLU
        bytes_accessed=int(2 * n * hidden * z_bytes
                           + weight_bytes * (grid_rows if n_kt > 1 else 1)))

    vmem_needed = (
        4 * tile_m * hidden * z_bytes                     # z + out tiles, 2 buffers
        + 2 * (2 * ti + ti) * hidden * w_bytes            # weight tiles, 2 buffers
        + 3 * tile_m * ti * 4                             # zz / h f32 intermediates
        + (tile_m * hidden * 4 if n_kt > 1 else 0))       # f32 accumulator scratch
    vmem_limit = int(min(max(2 * vmem_needed, 32 << 20),
                         int(0.8 * _vmem_capacity_bytes())))

    if n_kt == 1:
        grid = (grid_rows,)
        kernel = functools.partial(_gated_mlp_kernel_resident,
                                   inner_tile=ti, approx=approx)
        in_specs = [
            pl.BlockSpec((tile_m, hidden), lambda i: (i, 0)),
            pl.BlockSpec((None, hidden, 2 * ti), lambda i: (0, 0, 0)),
            pl.BlockSpec((ti, hidden), lambda i: (0, 0)),
        ]
        out_specs = pl.BlockSpec((tile_m, hidden), lambda i: (i, 0))
        scratch_shapes = ()
        dim_sem = ("parallel",)
    else:
        grid = (grid_rows, n_kt)
        kernel = functools.partial(_gated_mlp_kernel_streamed,
                                   inner_tile=ti, approx=approx)
        in_specs = [
            pl.BlockSpec((tile_m, hidden), lambda i, k: (i, 0)),
            pl.BlockSpec((None, hidden, 2 * ti), lambda i, k: (k, 0, 0)),
            pl.BlockSpec((ti, hidden), lambda i, k: (k, 0)),
        ]
        out_specs = pl.BlockSpec((tile_m, hidden), lambda i, k: (i, 0))
        scratch_shapes = (pltpu.VMEM((tile_m, hidden), jnp.float32),)
        dim_sem = ("parallel", "arbitrary")

    out = pl.pallas_call(
        kernel,
        out_shape=jax.ShapeDtypeStruct((n, hidden), zf.dtype),
        grid_spec=pltpu.PrefetchScalarGridSpec(
            num_scalar_prefetch=0,
            grid=grid,
            in_specs=in_specs,
            out_specs=out_specs,
            scratch_shapes=scratch_shapes,
        ),
        compiler_params=pltpu.CompilerParams(
            dimension_semantics=dim_sem,
            vmem_limit_bytes=vmem_limit),
        cost_estimate=cost,
    )(zf, w12, w3t)

    return out.reshape(orig_shape)


# --------------------------------------------------------------------------- #
# Parameter construction + references
# --------------------------------------------------------------------------- #
def make_params(key, hidden_size=128, inner_size_multiple_of=256,
                model_parallel_size=1, dtype=jnp.float32):
    """Deterministic synthetic weights with the exact shapes of the PyTorch module."""
    multiple_of = inner_size_multiple_of * model_parallel_size
    inner_size = int(2 * hidden_size * 4 / 3)
    inner_size = _round_up(inner_size, multiple_of)
    k1, k2, k3 = jax.random.split(key, 3)
    # PyTorch nn.Linear weight layout: (out_features, in_features)
    w1 = (jax.random.normal(k1, (inner_size, hidden_size), dtype)
          / jnp.sqrt(hidden_size).astype(dtype))
    w2 = (jax.random.normal(k2, (inner_size, hidden_size), dtype)
          / jnp.sqrt(hidden_size).astype(dtype))
    w3 = (jax.random.normal(k3, (hidden_size, inner_size), dtype)
          / jnp.sqrt(inner_size).astype(dtype))
    return w1, w2, w3


def reference_forward(z, w1, w2, w3):
    z1 = z @ w1.T
    z2 = z @ w2.T
    return (jax.nn.silu(z1) * z2) @ w3.T


def reference_forward_matched(z, w1, w2, w3, compute_dtype):
    """Same math with the same cast points as the kernel (for tighter checks)."""
    zc = z.astype(compute_dtype)
    z1 = jnp.dot(zc, w1.T.astype(compute_dtype), preferred_element_type=jnp.float32)
    z2 = jnp.dot(zc, w2.T.astype(compute_dtype), preferred_element_type=jnp.float32)
    h = jax.nn.silu(z1) * z2
    out = jnp.dot(h.astype(compute_dtype), w3.T.astype(compute_dtype),
                  preferred_element_type=jnp.float32)
    return out.astype(compute_dtype)


if __name__ == "__main__":
    key = jax.random.PRNGKey(0)
    kp, kz = jax.random.split(key)

    hidden = 128          # module default (inner becomes 512)
    batch, seq = 2, 8

    w1, w2, w3 = make_params(kp, hidden_size=hidden)
    z = jax.random.normal(kz, (batch, seq, hidden), jnp.float32)

    ref_f32 = reference_forward(z, w1, w2, w3)

    # --- fast path: bf16 activations in/out, bf16 weights, f32 acc + gate ----
    w12_bf, w3t_bf = prepare_weights(w1, w2, w3, compute_dtype=jnp.bfloat16)
    z_bf = z.astype(jnp.bfloat16)           # cast at the producer, not in a wrapper
    out_bf = jax.block_until_ready(parallel_gated_mlp(z_bf, w12_bf, w3t_bf))
    assert out_bf.shape == (batch, seq, hidden) and out_bf.dtype == jnp.bfloat16
    ref_bf = reference_forward_matched(z_bf, w1, w2, w3, jnp.bfloat16)
    assert jnp.allclose(out_bf.astype(jnp.float32), ref_bf.astype(jnp.float32),
                        atol=3e-2, rtol=3e-2), \
        "bf16 kernel mismatch vs matched-precision reference"
    assert jnp.allclose(out_bf.astype(jnp.float32), ref_f32,
                        atol=1e-1, rtol=1e-1), \
        "bf16 kernel mismatch vs f32 reference"

    # --- streamed path (n_kt > 1): force ti=256 to exercise the accumulator --
    w12_s, w3t_s = prepare_weights(w1, w2, w3, compute_dtype=jnp.bfloat16,
                                   max_inner_tile=256)
    assert w12_s.shape[0] == 2
    out_s = jax.block_until_ready(parallel_gated_mlp(z_bf, w12_s, w3t_s))
    assert jnp.allclose(out_s.astype(jnp.float32), ref_bf.astype(jnp.float32),
                        atol=3e-2, rtol=3e-2), \
        "streamed (n_kt>1) kernel mismatch vs matched-precision reference"

    # --- reference-precision path: f32 activations + weights -----------------
    w12_f32, w3t_f32 = prepare_weights(w1, w2, w3, compute_dtype=jnp.float32)
    out_f32 = jax.block_until_ready(parallel_gated_mlp(z, w12_f32, w3t_f32))
    assert out_f32.dtype == jnp.float32
    assert jnp.allclose(out_f32, ref_f32, atol=2e-2, rtol=2e-2), \
        "f32 kernel mismatch vs f32 reference"

    print("KERNEL_OK")
</pallas_src>

<mosaic_0001>
module attributes {stable_mosaic.version = 11 : i64} {
  func.func @_gated_mlp_kernel_resident(%arg0: i32, %arg1: memref<16x128xbf16, #tpu.memory_space<vmem>>, %arg2: memref<1x128x1024xbf16, #tpu.memory_space<vmem>>, %arg3: memref<512x128xbf16, #tpu.memory_space<vmem>>, %arg4: memref<16x128xbf16, #tpu.memory_space<vmem>>) attributes {dimension_semantics = [#tpu.dimension_semantics<parallel>], iteration_bounds = array<i64: 1>, scalar_prefetch = 0 : i64, scratch_operands = 0 : i64, tpu.core_type = #tpu.core_type<tc>, window_params = [{transform_indices = @transform_0, window_bounds = array<i64: 16, 128>}, {pipeline_mode = #tpu.pipeline_mode<synchronous>, transform_indices = @transform_1, window_bounds = array<i64: 1, 128, 1024>}, {pipeline_mode = #tpu.pipeline_mode<synchronous>, transform_indices = @transform_2, window_bounds = array<i64: 512, 128>}, {transform_indices = @transform_3, window_bounds = array<i64: 16, 128>}]} {
    %c0 = arith.constant 0 : index
    %c0_0 = arith.constant 0 : index
    %0 = vector.load %arg1[%c0, %c0_0] : memref<16x128xbf16, #tpu.memory_space<vmem>>, vector<16x128xbf16>
    %c0_1 = arith.constant 0 : index
    %c0_2 = arith.constant 0 : index
    %c0_3 = arith.constant 0 : index
    %1 = vector.load %arg2[%c0_1, %c0_2, %c0_3] : memref<1x128x1024xbf16, #tpu.memory_space<vmem>>, vector<1x128x1024xbf16>
    %2 = vector.shape_cast %1 : vector<1x128x1024xbf16> to vector<128x1024xbf16>
    %cst = arith.constant dense<0.000000e+00> : vector<16x1024xf32>
    %3 = tpu.matmul %0, %2, %cst {dimension_numbers = #tpu.dot_dimension_numbers<[1], [0], [0], [1], [0, 0, 1, 1], [], []>} : vector<16x128xbf16>, vector<128x1024xbf16>, vector<16x1024xf32> -> vector<16x1024xf32>
    %4 = vector.extract_strided_slice %3 {offsets = [0, 0], sizes = [16, 512], strides = [1, 1]} : vector<16x1024xf32> to vector<16x512xf32>
    %5 = vector.extract_strided_slice %3 {offsets = [0, 512], sizes = [16, 512], strides = [1, 1]} : vector<16x1024xf32> to vector<16x512xf32>
    %cst_4 = arith.constant 0.000000e+00 : f32
    %6 = vector.broadcast %cst_4 : f32 to vector<16x512xf32>
    %7 = arith.subf %6, %4 : vector<16x512xf32>
    %8 = math.exp %7 : vector<16x512xf32>
    %cst_5 = arith.constant 1.000000e+00 : f32
    %9 = vector.broadcast %cst_5 : f32 to vector<16x512xf32>
    %10 = arith.addf %9, %8 : vector<16x512xf32>
    %11 = tpu.reciprocal %10 {approx = true} : vector<16x512xf32> -> vector<16x512xf32>
    %12 = arith.mulf %4, %11 : vector<16x512xf32>
    %13 = arith.mulf %12, %5 : vector<16x512xf32>
    %14 = arith.truncf %13 : vector<16x512xf32> to vector<16x512xbf16>
    %c0_6 = arith.constant 0 : index
    %c0_7 = arith.constant 0 : index
    %15 = vector.load %arg3[%c0_6, %c0_7] : memref<512x128xbf16, #tpu.memory_space<vmem>>, vector<512x128xbf16>
    %cst_8 = arith.constant dense<0.000000e+00> : vector<16x128xf32>
    %16 = tpu.matmul %14, %15, %cst_8 {dimension_numbers = #tpu.dot_dimension_numbers<[1], [0], [0], [1], [0, 0, 1, 1], [], []>} : vector<16x512xbf16>, vector<512x128xbf16>, vector<16x128xf32> -> vector<16x128xf32>
    %17 = arith.truncf %16 : vector<16x128xf32> to vector<16x128xbf16>
    %c0_9 = arith.constant 0 : index
    %c0_10 = arith.constant 0 : index
    %18 = vector.load %arg4[%c0_9, %c0_10] : memref<16x128xbf16, #tpu.memory_space<vmem>>, vector<16x128xbf16>
    tpu.vector_store %arg4[%c0_9, %c0_10], %17 {strides = array<i32>} : memref<16x128xbf16, #tpu.memory_space<vmem>>, vector<16x128xbf16>,
    return
  }
  func.func @transform_0(%arg0: i32) -> (i32, i32) {
    %c0_i32 = arith.constant 0 : i32
    %c0_i32_0 = arith.constant 0 : i32
    return %arg0, %c0_i32 : i32, i32
  }
  func.func @transform_1(%arg0: i32) -> (i32, i32, i32) {
    %c0_i32 = arith.constant 0 : i32
    %c0_i32_0 = arith.constant 0 : i32
    %c0_i32_1 = arith.constant 0 : i32
    %c0_i32_2 = arith.constant 0 : i32
    return %c0_i32, %c0_i32_0, %c0_i32_1 : i32, i32, i32
  }
  func.func @transform_2(%arg0: i32) -> (i32, i32) {
    %c0_i32 = arith.constant 0 : i32
    %c0_i32_0 = arith.constant 0 : i32
    %c0_i32_1 = arith.constant 0 : i32
    return %c0_i32, %c0_i32_0 : i32, i32
  }
  func.func @transform_3(%arg0: i32) -> (i32, i32) {
    %c0_i32 = arith.constant 0 : i32
    %c0_i32_0 = arith.constant 0 : i32
    return %arg0, %c0_i32 : i32, i32
  }
}

</mosaic_0001>

<llo_original>
// kernel: tpu_custom_call.1
$region0: #{tpu_custom_call.1}
  #allocation0 [shape = 'u32[]', space=smem, size = 0x4, offset = 0x4, fixed_abs, tag = 'smem constant byte address 0x4 - core index']
  #allocation1 [shape = 'u32[144,128]{1,0:T(1,128)}', space=vmem, size = 0x12000, scoped, tag = 'internal scratch']
  %s0 = inlined_call_operand.hbm [shape: bf16[16,128], index: 0, kind: input, shape index: {}]
  %s1 = inlined_call_operand.hbm [shape: bf16[1,128,1024], index: 1, kind: input, shape index: {}]
  %s2 = inlined_call_operand.hbm [shape: bf16[512,128], index: 2, kind: input, shape index: {}]
  %s3 = inlined_call_operand.hbm [shape: bf16[16,128], index: 3, kind: output, shape index: {}]
  %s4 = sld [smem:[#allocation0]]
  $region34: #{tpu_custom_call.1} parent=0
    _
  %s6 = ssub.s32 1, %s4
  %s7 = scalar_select 0, %s6, %s4
  $region1: #{tpu_custom_call.1} parent=0
    #allocation2 [shape = 'u8[4096]{0}', space=vmem, size = 0x1000, scoped, tag = 'input window, operand 0, single buffered']
    #allocation3 [shape = 's32[1]{0}', space=sflag, size = 0x4, scoped, tag = 'scoped memory for tpu_custom_call.1']
    #allocation4 [shape = 's32[1]{0}', space=sflag, size = 0x4, scoped, tag = 'scoped memory for tpu_custom_call.1']
    #allocation5 [shape = 'u8[262144]{0}', space=vmem, size = 0x40000, scoped, tag = 'input window, operand 1, single buffered']
    #allocation6 [shape = 's32[1]{0}', space=sflag, size = 0x4, scoped, tag = 'scoped memory for tpu_custom_call.1']
    #allocation7 [shape = 'u8[131072]{0}', space=vmem, size = 0x20000, scoped, tag = 'input window, operand 2, single buffered']
    #allocation8 [shape = 'u8[4096]{0}', space=vmem, size = 0x1000, scoped, tag = 'output window, operand 0, single buffered']
    %8 = vsyncpa [#allocation3], 0
    %9 = vsyncpa [#allocation6], 0
    %10 = vsyncpa [#allocation4], 0
    // Predicated region
    $region2: #{tpu_custom_call.1} parent=1 // pred_check
      _
    $region3: #{tpu_custom_call.1} parent=1 // pred_check_branch
      %12 = sbr.rel (0) target = $region5
    $region4: #{tpu_custom_call.1} parent=1 // pred_region
      %s14 = ssub.s32 128, 128
      %15 = vsyncadd [#allocation3], %s14
      %s16 = sshll.u32 [#allocation2], 4
      %s17 = int_to_ptr.vmem [resolvable:$true] %s16
      %22 = dma.hbm_to_vmem [thread:$0]  %s0, 128, %s17, [#allocation3], 64, 64, 4
    $region5: #{tpu_custom_call.1} parent=1 // pred_fallthru
      _
    // Predicated region
    $region6: #{tpu_custom_call.1} parent=1 // pred_check
      _
    $region7: #{tpu_custom_call.1} parent=1 // pred_check_branch
      %24 = sbr.rel (0) target = $region9
    $region8: #{tpu_custom_call.1} parent=1 // pred_region
      %s26 = ssub.s32 8192, 8192
      %27 = vsyncadd [#allocation6], %s26
      %s28 = sshll.u32 [#allocation5], 4
      %s29 = int_to_ptr.vmem [resolvable:$true] %s28
      %34 = dma.hbm_to_vmem [thread:$0]  %s1, 8192, %s29, [#allocation6], 512, 512, 32
    $region9: #{tpu_custom_call.1} parent=1 // pred_fallthru
      _
    // Predicated region
    $region10: #{tpu_custom_call.1} parent=1 // pred_check
      _
    $region11: #{tpu_custom_call.1} parent=1 // pred_check_branch
      %36 = sbr.rel (0) target = $region13
    $region12: #{tpu_custom_call.1} parent=1 // pred_region
      %s38 = ssub.s32 4096, 4096
      %39 = vsyncadd [#allocation6], %s38
      %s40 = sshll.u32 [#allocation7], 4
      %s41 = int_to_ptr.vmem [resolvable:$true] %s40
      %46 = dma.hbm_to_vmem [thread:$0]  %s2, 4096, %s41, [#allocation6], 64, 64, 4
    $region13: #{tpu_custom_call.1} parent=1 // pred_fallthru
      _
    // Predicated region
    $region14: #{tpu_custom_call.1} parent=1 // pred_check
      _
    $region15: #{tpu_custom_call.1} parent=1 // pred_check_branch
      %48 = sbr.rel (0) target = $region17
    $region16: #{tpu_custom_call.1} parent=1 // pred_region
      %49 = dma.done [#allocation3], 128
    $region17: #{tpu_custom_call.1} parent=1 // pred_fallthru
      _
    // Predicated region
    $region18: #{tpu_custom_call.1} parent=1 // pred_check
      _
    $region19: #{tpu_custom_call.1} parent=1 // pred_check_branch
      %51 = sbr.rel (0) target = $region21
    $region20: #{tpu_custom_call.1} parent=1 // pred_region
      %52 = dma.done [#allocation6], 8192
    $region21: #{tpu_custom_call.1} parent=1 // pred_fallthru
      _
    // Predicated region
    $region22: #{tpu_custom_call.1} parent=1 // pred_check
      _
    $region23: #{tpu_custom_call.1} parent=1 // pred_check_branch
      %54 = sbr.rel (0) target = $region25
    $region24: #{tpu_custom_call.1} parent=1 // pred_region
      %55 = dma.done [#allocation6], 4096
    $region25: #{tpu_custom_call.1} parent=1 // pred_fallthru
      _
    %v57 = vld [vmem:[#allocation2] sm:$0xf]
    %v58 = vld [vmem:[#allocation2 + $0x4] sm:$0xf]
    %v59 = vld [vmem:[#allocation5] sm:$0xff]
    %v60 = vld [vmem:[#allocation5 + $0x8] sm:$0xff]
    %v61 = vld [vmem:[#allocation5 + $0x10] sm:$0xff]
    %v62 = vld [vmem:[#allocation5 + $0x18] sm:$0xff]
    %v63 = vld [vmem:[#allocation5 + $0x20] sm:$0xff]
    %v64 = vld [vmem:[#allocation5 + $0x28] sm:$0xff]
    %v65 = vld [vmem:[#allocation5 + $0x30] sm:$0xff]
    %v66 = vld [vmem:[#allocation5 + $0x38] sm:$0xff]
    %v67 = vld [vmem:[#allocation5 + $0x40] sm:$0xff]
    %v68 = vld [vmem:[#allocation5 + $0x48] sm:$0xff]
    %v69 = vld [vmem:[#allocation5 + $0x50] sm:$0xff]
    %v70 = vld [vmem:[#allocation5 + $0x58] sm:$0xff]
    %v71 = vld [vmem:[#allocation5 + $0x60] sm:$0xff]
    %v72 = vld [vmem:[#allocation5 + $0x68] sm:$0xff]
    %v73 = vld [vmem:[#allocation5 + $0x70] sm:$0xff]
    %v74 = vld [vmem:[#allocation5 + $0x78] sm:$0xff]
    %v75 = vld [vmem:[#allocation5 + $0x80] sm:$0xff]
    %v76 = vld [vmem:[#allocation5 + $0x88] sm:$0xff]
    %v77 = vld [vmem:[#allocation5 + $0x90] sm:$0xff]
    %v78 = vld [vmem:[#allocation5 + $0x98] sm:$0xff]
    %v79 = vld [vmem:[#allocation5 + $0xa0] sm:$0xff]
    %v80 = vld [vmem:[#allocation5 + $0xa8] sm:$0xff]
    %v81 = vld [vmem:[#allocation5 + $0xb0] sm:$0xff]
    %v82 = vld [vmem:[#allocation5 + $0xb8] sm:$0xff]
    %v83 = vld [vmem:[#allocation5 + $0xc0] sm:$0xff]
    %v84 = vld [vmem:[#allocation5 + $0xc8] sm:$0xff]
    %v85 = vld [vmem:[#allocation5 + $0xd0] sm:$0xff]
    %v86 = vld [vmem:[#allocation5 + $0xd8] sm:$0xff]
    %v87 = vld [vmem:[#allocation5 + $0xe0] sm:$0xff]
    %v88 = vld [vmem:[#allocation5 + $0xe8] sm:$0xff]
    %v89 = vld [vmem:[#allocation5 + $0xf0] sm:$0xff]
    %v90 = vld [vmem:[#allocation5 + $0xf8] sm:$0xff]
    %v91 = vld [vmem:[#allocation5 + $0x100] sm:$0xff]
    %v92 = vld [vmem:[#allocation5 + $0x108] sm:$0xff]
    %v93 = vld [vmem:[#allocation5 + $0x110] sm:$0xff]
    %v94 = vld [vmem:[#allocation5 + $0x118] sm:$0xff]
    %v95 = vld [vmem:[#allocation5 + $0x120] sm:$0xff]
    %v96 = vld [vmem:[#allocation5 + $0x128] sm:$0xff]
    %v97 = vld [vmem:[#allocation5 + $0x130] sm:$0xff]
    %v98 = vld [vmem:[#allocation5 + $0x138] sm:$0xff]
    %v99 = vld [vmem:[#allocation5 + $0x140] sm:$0xff]
    %v100 = vld [vmem:[#allocation5 + $0x148] sm:$0xff]
    %v101 = vld [vmem:[#allocation5 + $0x150] sm:$0xff]
    %v102 = vld [vmem:[#allocation5 + $0x158] sm:$0xff]
    %v103 = vld [vmem:[#allocation5 + $0x160] sm:$0xff]
    %v104 = vld [vmem:[#allocation5 + $0x168] sm:$0xff]
    %v105 = vld [vmem:[#allocation5 + $0x170] sm:$0xff]
    %v106 = vld [vmem:[#allocation5 + $0x178] sm:$0xff]
    %v107 = vld [vmem:[#allocation5 + $0x180] sm:$0xff]
    %v108 = vld [vmem:[#allocation5 + $0x188] sm:$0xff]
    %v109 = vld [vmem:[#allocation5 + $0x190] sm:$0xff]
    %v110 = vld [vmem:[#allocation5 + $0x198] sm:$0xff]
    %v111 = vld [vmem:[#allocation5 + $0x1a0] sm:$0xff]
    %v112 = vld [vmem:[#allocation5 + $0x1a8] sm:$0xff]
    %v113 = vld [vmem:[#allocation5 + $0x1b0] sm:$0xff]
    %v114 = vld [vmem:[#allocation5 + $0x1b8] sm:$0xff]
    %v115 = vld [vmem:[#allocation5 + $0x1c0] sm:$0xff]
    %v116 = vld [vmem:[#allocation5 + $0x1c8] sm:$0xff]
    %v117 = vld [vmem:[#allocation5 + $0x1d0] sm:$0xff]
    %v118 = vld [vmem:[#allocation5 + $0x1d8] sm:$0xff]
    %v119 = vld [vmem:[#allocation5 + $0x1e0] sm:$0xff]
    %v120 = vld [vmem:[#allocation5 + $0x1e8] sm:$0xff]
    %v121 = vld [vmem:[#allocation5 + $0x1f0] sm:$0xff]
    %v122 = vld [vmem:[#allocation5 + $0x1f8] sm:$0xff]
    %v125 = vunpack.c.l.b16 %v57
    %v126 = vunpack.c.l.b16 %v58
    %v127 = vpack.c.b16 %v126, %v125
    %v193 = vunpack.c.l.b16 %v59
    %v194 = vunpack.c.h.b16 %v59
    %v195 = vunpack.c.l.b16 %v60
    %v196 = vunpack.c.h.b16 %v60
    %v197 = vunpack.c.l.b16 %v61
    %v198 = vunpack.c.h.b16 %v61
    %v199 = vunpack.c.l.b16 %v62
    %v200 = vunpack.c.h.b16 %v62
    %v201 = vunpack.c.l.b16 %v63
    %v202 = vunpack.c.h.b16 %v63
    %v203 = vunpack.c.l.b16 %v64
    %v204 = vunpack.c.h.b16 %v64
    %v205 = vunpack.c.l.b16 %v65
    %v206 = vunpack.c.h.b16 %v65
    %v207 = vunpack.c.l.b16 %v66
    %v208 = vunpack.c.h.b16 %v66
    %v209 = vunpack.c.l.b16 %v67
    %v210 = vunpack.c.h.b16 %v67
    %v211 = vunpack.c.l.b16 %v68
    %v212 = vunpack.c.h.b16 %v68
    %v213 = vunpack.c.l.b16 %v69
    %v214 = vunpack.c.h.b16 %v69
    %v215 = vunpack.c.l.b16 %v70
    %v216 = vunpack.c.h.b16 %v70
    %v217 = vunpack.c.l.b16 %v71
    %v218 = vunpack.c.h.b16 %v71
    %v219 = vunpack.c.l.b16 %v72
    %v220 = vunpack.c.h.b16 %v72
    %v221 = vunpack.c.l.b16 %v73
    %v222 = vunpack.c.h.b16 %v73
    %v223 = vunpack.c.l.b16 %v74
    %v224 = vunpack.c.h.b16 %v74
    %v225 = vunpack.c.l.b16 %v75
    %v226 = vunpack.c.h.b16 %v75
    %v227 = vunpack.c.l.b16 %v76
    %v228 = vunpack.c.h.b16 %v76
    %v229 = vunpack.c.l.b16 %v77
    %v230 = vunpack.c.h.b16 %v77
    %v231 = vunpack.c.l.b16 %v78
    %v232 = vunpack.c.h.b16 %v78
    %v233 = vunpack.c.l.b16 %v79
    %v234 = vunpack.c.h.b16 %v79
    %v235 = vunpack.c.l.b16 %v80
    %v236 = vunpack.c.h.b16 %v80
    %v237 = vunpack.c.l.b16 %v81
    %v238 = vunpack.c.h.b16 %v81
    %v239 = vunpack.c.l.b16 %v82
    %v240 = vunpack.c.h.b16 %v82
    %v241 = vunpack.c.l.b16 %v83
    %v242 = vunpack.c.h.b16 %v83
    %v243 = vunpack.c.l.b16 %v84
    %v244 = vunpack.c.h.b16 %v84
    %v245 = vunpack.c.l.b16 %v85
    %v246 = vunpack.c.h.b16 %v85
    %v247 = vunpack.c.l.b16 %v86
    %v248 = vunpack.c.h.b16 %v86
    %v249 = vunpack.c.l.b16 %v87
    %v250 = vunpack.c.h.b16 %v87
    %v251 = vunpack.c.l.b16 %v88
    %v252 = vunpack.c.h.b16 %v88
    %v253 = vunpack.c.l.b16 %v89
    %v254 = vunpack.c.h.b16 %v89
    %v255 = vunpack.c.l.b16 %v90
    %v256 = vunpack.c.h.b16 %v90
    %v257 = vunpack.c.l.b16 %v91
    %v258 = vunpack.c.h.b16 %v91
    %v259 = vunpack.c.l.b16 %v92
    %v260 = vunpack.c.h.b16 %v92
    %v261 = vunpack.c.l.b16 %v93
    %v262 = vunpack.c.h.b16 %v93
    %v263 = vunpack.c.l.b16 %v94
    %v264 = vunpack.c.h.b16 %v94
    %v265 = vunpack.c.l.b16 %v95
    %v266 = vunpack.c.h.b16 %v95
    %v267 = vunpack.c.l.b16 %v96
    %v268 = vunpack.c.h.b16 %v96
    %v269 = vunpack.c.l.b16 %v97
    %v270 = vunpack.c.h.b16 %v97
    %v271 = vunpack.c.l.b16 %v98
    %v272 = vunpack.c.h.b16 %v98
    %v273 = vunpack.c.l.b16 %v99
    %v274 = vunpack.c.h.b16 %v99
    %v275 = vunpack.c.l.b16 %v100
    %v276 = vunpack.c.h.b16 %v100
    %v277 = vunpack.c.l.b16 %v101
    %v278 = vunpack.c.h.b16 %v101
    %v279 = vunpack.c.l.b16 %v102
    %v280 = vunpack.c.h.b16 %v102
    %v281 = vunpack.c.l.b16 %v103
    %v282 = vunpack.c.h.b16 %v103
    %v283 = vunpack.c.l.b16 %v104
    %v284 = vunpack.c.h.b16 %v104
    %v285 = vunpack.c.l.b16 %v105
    %v286 = vunpack.c.h.b16 %v105
    %v287 = vunpack.c.l.b16 %v106
    %v288 = vunpack.c.h.b16 %v106
    %v289 = vunpack.c.l.b16 %v107
    %v290 = vunpack.c.h.b16 %v107
    %v291 = vunpack.c.l.b16 %v108
    %v292 = vunpack.c.h.b16 %v108
    %v293 = vunpack.c.l.b16 %v109
    %v294 = vunpack.c.h.b16 %v109
    %v295 = vunpack.c.l.b16 %v110
    %v296 = vunpack.c.h.b16 %v110
    %v297 = vunpack.c.l.b16 %v111
    %v298 = vunpack.c.h.b16 %v111
    %v299 = vunpack.c.l.b16 %v112
    %v300 = vunpack.c.h.b16 %v112
    %v301 = vunpack.c.l.b16 %v113
    %v302 = vunpack.c.h.b16 %v113
    %v303 = vunpack.c.l.b16 %v114
    %v304 = vunpack.c.h.b16 %v114
    %v305 = vunpack.c.l.b16 %v115
    %v306 = vunpack.c.h.b16 %v115
    %v307 = vunpack.c.l.b16 %v116
    %v308 = vunpack.c.h.b16 %v116
    %v309 = vunpack.c.l.b16 %v117
    %v310 = vunpack.c.h.b16 %v117
    %v311 = vunpack.c.l.b16 %v118
    %v312 = vunpack.c.h.b16 %v118
    %v313 = vunpack.c.l.b16 %v119
    %v314 = vunpack.c.h.b16 %v119
    %v315 = vunpack.c.l.b16 %v120
    %v316 = vunpack.c.h.b16 %v120
    %v317 = vunpack.c.l.b16 %v121
    %v318 = vunpack.c.h.b16 %v121
    %v319 = vunpack.c.l.b16 %v122
    %v320 = vunpack.c.h.b16 %v122
    %v321 = vpack.c.b16 %v201, %v193
    %v322 = vpack.c.b16 %v202, %v194
    %v323 = vpack.c.b16 %v203, %v195
    %v324 = vpack.c.b16 %v204, %v196
    %v325 = vpack.c.b16 %v205, %v197
    %v326 = vpack.c.b16 %v206, %v198
    %v327 = vpack.c.b16 %v207, %v199
    %v328 = vpack.c.b16 %v208, %v200
    %v329 = vpack.c.b16 %v217, %v209
    %v330 = vpack.c.b16 %v218, %v210
    %v331 = vpack.c.b16 %v219, %v211
    %v332 = vpack.c.b16 %v220, %v212
    %v333 = vpack.c.b16 %v221, %v213
    %v334 = vpack.c.b16 %v222, %v214
    %v335 = vpack.c.b16 %v223, %v215
    %v336 = vpack.c.b16 %v224, %v216
    %v337 = vpack.c.b16 %v233, %v225
    %v338 = vpack.c.b16 %v234, %v226
    %v339 = vpack.c.b16 %v235, %v227
    %v340 = vpack.c.b16 %v236, %v228
    %v341 = vpack.c.b16 %v237, %v229
    %v342 = vpack.c.b16 %v238, %v230
    %v343 = vpack.c.b16 %v239, %v231
    %v344 = vpack.c.b16 %v240, %v232
    %v345 = vpack.c.b16 %v249, %v241
    %v346 = vpack.c.b16 %v250, %v242
    %v347 = vpack.c.b16 %v251, %v243
    %v348 = vpack.c.b16 %v252, %v244
    %v349 = vpack.c.b16 %v253, %v245
    %v350 = vpack.c.b16 %v254, %v246
    %v351 = vpack.c.b16 %v255, %v247
    %v352 = vpack.c.b16 %v256, %v248
    %v353 = vpack.c.b16 %v265, %v257
    %v354 = vpack.c.b16 %v266, %v258
    %v355 = vpack.c.b16 %v267, %v259
    %v356 = vpack.c.b16 %v268, %v260
    %v357 = vpack.c.b16 %v269, %v261
    %v358 = vpack.c.b16 %v270, %v262
    %v359 = vpack.c.b16 %v271, %v263
    %v360 = vpack.c.b16 %v272, %v264
    %v361 = vpack.c.b16 %v281, %v273
    %v362 = vpack.c.b16 %v282, %v274
    %v363 = vpack.c.b16 %v283, %v275
    %v364 = vpack.c.b16 %v284, %v276
    %v365 = vpack.c.b16 %v285, %v277
    %v366 = vpack.c.b16 %v286, %v278
    %v367 = vpack.c.b16 %v287, %v279
    %v368 = vpack.c.b16 %v288, %v280
    %v369 = vpack.c.b16 %v297, %v289
    %v370 = vpack.c.b16 %v298, %v290
    %v371 = vpack.c.b16 %v299, %v291
    %v372 = vpack.c.b16 %v300, %v292
    %v373 = vpack.c.b16 %v301, %v293
    %v374 = vpack.c.b16 %v302, %v294
    %v375 = vpack.c.b16 %v303, %v295
    %v376 = vpack.c.b16 %v304, %v296
    %v377 = vpack.c.b16 %v313, %v305
    %v378 = vpack.c.b16 %v314, %v306
    %v379 = vpack.c.b16 %v315, %v307
    %v380 = vpack.c.b16 %v316, %v308
    %v381 = vpack.c.b16 %v317, %v309
    %v382 = vpack.c.b16 %v318, %v310
    %v383 = vpack.c.b16 %v319, %v311
    %v384 = vpack.c.b16 %v320, %v312
    %449 = vmatprep.subr.bf16.mxu0 %v322
    %450 = vmatpush1.bf16.msra.mxu0 %v321
    %451 = vmatprep.subr.bf16.mxu0 %v330
    %452 = vmatpush1.bf16.msra.mxu0 %v329
    %453 = vmatprep.subr.bf16.mxu0 %v338
    %454 = vmatpush1.bf16.msra.mxu0 %v337
    %455 = vmatprep.subr.bf16.mxu0 %v346
    %456 = vmatpush1.bf16.msra.mxu0 %v345
    %457 = vmatprep.subr.bf16.mxu0 %v354
    %458 = vmatpush1.bf16.msra.mxu0 %v353
    %459 = vmatprep.subr.bf16.mxu0 %v362
    %460 = vmatpush1.bf16.msra.mxu0 %v361
    %461 = vmatprep.subr.bf16.mxu0 %v370
    %462 = vmatpush1.bf16.msra.mxu0 %v369
    %463 = vmatprep.subr.bf16.mxu0 %v378
    %464 = vmatpush1.bf16.msra.mxu0 %v377
    %465 = vmatprep.subr.bf16.mxu0 0
    %466 = vmatpush1.bf16.msra.mxu0 0
    %467 = vmatprep.subr.bf16.mxu0 0
    %468 = vmatpush1.bf16.msra.mxu0 0
    %469 = vmatprep.subr.bf16.mxu0 0
    %470 = vmatpush1.bf16.msra.mxu0 0
    %471 = vmatprep.subr.bf16.mxu0 0
    %472 = vmatpush1.bf16.msra.mxu0 0
    %473 = vmatprep.subr.bf16.mxu0 0
    %474 = vmatpush1.bf16.msra.mxu0 0
    %475 = vmatprep.subr.bf16.mxu0 0
    %476 = vmatpush1.bf16.msra.mxu0 0
    %477 = vmatprep.subr.bf16.mxu0 0
    %478 = vmatpush1.bf16.msra.mxu0 0
    %479 = vmatprep.subr.bf16.mxu0 0
    %480 = vmatpush1.bf16.msra.mxu0 0
    %481 = vmatprep.mubr.bf16.mxu0 0
    %482 = vmatmul.mubr.bf16.gmra.mrb[0].mxu0 %v127
    %v483 = vpop.f32.mrb[0].mxu0
    %v484 = vadd.f32 0.0, %v483
    %v485 = vpop.f32.mrb[0].mxu0
    %v486 = vadd.f32 0.0, %v485
    %v487 = vpop.f32.mrb[0].mxu0
    %v488 = vadd.f32 0.0, %v487
    %v489 = vpop.f32.mrb[0].mxu0
    %v490 = vadd.f32 0.0, %v489
    %491 = vdwg.mxu0
    %492 = vmatprep.subr.bf16.mxu0 %v324
    %493 = vmatpush1.bf16.msra.mxu0 %v323
    %494 = vmatprep.subr.bf16.mxu0 %v332
    %495 = vmatpush1.bf16.msra.mxu0 %v331
    %496 = vmatprep.subr.bf16.mxu0 %v340
    %497 = vmatpush1.bf16.msra.mxu0 %v339
    %498 = vmatprep.subr.bf16.mxu0 %v348
    %499 = vmatpush1.bf16.msra.mxu0 %v347
    %500 = vmatprep.subr.bf16.mxu0 %v356
    %501 = vmatpush1.bf16.msra.mxu0 %v355
    %502 = vmatprep.subr.bf16.mxu0 %v364
    %503 = vmatpush1.bf16.msra.mxu0 %v363
    %504 = vmatprep.subr.bf16.mxu0 %v372
    %505 = vmatpush1.bf16.msra.mxu0 %v371
    %506 = vmatprep.subr.bf16.mxu0 %v380
    %507 = vmatpush1.bf16.msra.mxu0 %v379
    %508 = vmatprep.subr.bf16.mxu0 0
    %509 = vmatpush1.bf16.msra.mxu0 0
    %510 = vmatprep.subr.bf16.mxu0 0
    %511 = vmatpush1.bf16.msra.mxu0 0
    %512 = vmatprep.subr.bf16.mxu0 0
    %513 = vmatpush1.bf16.msra.mxu0 0
    %514 = vmatprep.subr.bf16.mxu0 0
    %515 = vmatpush1.bf16.msra.mxu0 0
    %516 = vmatprep.subr.bf16.mxu0 0
    %517 = vmatpush1.bf16.msra.mxu0 0
    %518 = vmatprep.subr.bf16.mxu0 0
    %519 = vmatpush1.bf16.msra.mxu0 0
    %520 = vmatprep.subr.bf16.mxu0 0
    %521 = vmatpush1.bf16.msra.mxu0 0
    %522 = vmatprep.subr.bf16.mxu0 0
    %523 = vmatpush1.bf16.msra.mxu0 0
    %524 = vmatprep.mubr.bf16.mxu0 0
    %525 = vmatmul.mubr.bf16.gmra.mrb[0].mxu0 %v127
    %v526 = vpop.f32.mrb[0].mxu0
    %v527 = vadd.f32 0.0, %v526
    %v528 = vpop.f32.mrb[0].mxu0
    %v529 = vadd.f32 0.0, %v528
    %v530 = vpop.f32.mrb[0].mxu0
    %v531 = vadd.f32 0.0, %v530
    %v532 = vpop.f32.mrb[0].mxu0
    %v533 = vadd.f32 0.0, %v532
    %534 = vdwg.mxu0
    %535 = vmatprep.subr.bf16.mxu0 %v326
    %536 = vmatpush1.bf16.msra.mxu0 %v325
    %537 = vmatprep.subr.bf16.mxu0 %v334
    %538 = vmatpush1.bf16.msra.mxu0 %v333
    %539 = vmatprep.subr.bf16.mxu0 %v342
    %540 = vmatpush1.bf16.msra.mxu0 %v341
    %541 = vmatprep.subr.bf16.mxu0 %v350
    %542 = vmatpush1.bf16.msra.mxu0 %v349
    %543 = vmatprep.subr.bf16.mxu0 %v358
    %544 = vmatpush1.bf16.msra.mxu0 %v357
    %545 = vmatprep.subr.bf16.mxu0 %v366
    %546 = vmatpush1.bf16.msra.mxu0 %v365
    %547 = vmatprep.subr.bf16.mxu0 %v374
    %548 = vmatpush1.bf16.msra.mxu0 %v373
    %549 = vmatprep.subr.bf16.mxu0 %v382
    %550 = vmatpush1.bf16.msra.mxu0 %v381
    %551 = vmatprep.subr.bf16.mxu0 0
    %552 = vmatpush1.bf16.msra.mxu0 0
    %553 = vmatprep.subr.bf16.mxu0 0
    %554 = vmatpush1.bf16.msra.mxu0 0
    %555 = vmatprep.subr.bf16.mxu0 0
    %556 = vmatpush1.bf16.msra.mxu0 0
    %557 = vmatprep.subr.bf16.mxu0 0
    %558 = vmatpush1.bf16.msra.mxu0 0
    %559 = vmatprep.subr.bf16.mxu0 0
    %560 = vmatpush1.bf16.msra.mxu0 0
    %561 = vmatprep.subr.bf16.mxu0 0
    %562 = vmatpush1.bf16.msra.mxu0 0
    %563 = vmatprep.subr.bf16.mxu0 0
    %564 = vmatpush1.bf16.msra.mxu0 0
    %565 = vmatprep.subr.bf16.mxu0 0
    %566 = vmatpush1.bf16.msra.mxu0 0
    %567 = vmatprep.mubr.bf16.mxu0 0
    %568 = vmatmul.mubr.bf16.gmra.mrb[0].mxu0 %v127
    %v569 = vpop.f32.mrb[0].mxu0
    %v570 = vadd.f32 0.0, %v569
    %v571 = vpop.f32.mrb[0].mxu0
    %v572 = vadd.f32 0.0, %v571
    %v573 = vpop.f32.mrb[0].mxu0
    %v574 = vadd.f32 0.0, %v573
    %v575 = vpop.f32.mrb[0].mxu0
    %v576 = vadd.f32 0.0, %v575
    %577 = vdwg.mxu0
    %578 = vmatprep.subr.bf16.mxu0 %v328
    %579 = vmatpush1.bf16.msra.mxu0 %v327
    %580 = vmatprep.subr.bf16.mxu0 %v336
    %581 = vmatpush1.bf16.msra.mxu0 %v335
    %582 = vmatprep.subr.bf16.mxu0 %v344
    %583 = vmatpush1.bf16.msra.mxu0 %v343
    %584 = vmatprep.subr.bf16.mxu0 %v352
    %585 = vmatpush1.bf16.msra.mxu0 %v351
    %586 = vmatprep.subr.bf16.mxu0 %v360
    %587 = vmatpush1.bf16.msra.mxu0 %v359
    %588 = vmatprep.subr.bf16.mxu0 %v368
    %589 = vmatpush1.bf16.msra.mxu0 %v367
    %590 = vmatprep.subr.bf16.mxu0 %v376
    %591 = vmatpush1.bf16.msra.mxu0 %v375
    %592 = vmatprep.subr.bf16.mxu0 %v384
    %593 = vmatpush1.bf16.msra.mxu0 %v383
    %594 = vmatprep.subr.bf16.mxu0 0
    %595 = vmatpush1.bf16.msra.mxu0 0
    %596 = vmatprep.subr.bf16.mxu0 0
    %597 = vmatpush1.bf16.msra.mxu0 0
    %598 = vmatprep.subr.bf16.mxu0 0
    %599 = vmatpush1.bf16.msra.mxu0 0
    %600 = vmatprep.subr.bf16.mxu0 0
    %601 = vmatpush1.bf16.msra.mxu0 0
    %602 = vmatprep.subr.bf16.mxu0 0
    %603 = vmatpush1.bf16.msra.mxu0 0
    %604 = vmatprep.subr.bf16.mxu0 0
    %605 = vmatpush1.bf16.msra.mxu0 0
    %606 = vmatprep.subr.bf16.mxu0 0
    %607 = vmatpush1.bf16.msra.mxu0 0
    %608 = vmatprep.subr.bf16.mxu0 0
    %609 = vmatpush1.bf16.msra.mxu0 0
    %610 = vmatprep.mubr.bf16.mxu0 0
    %611 = vmatmul.mubr.bf16.gmra.mrb[0].mxu0 %v127
    %v612 = vpop.f32.mrb[0].mxu0
    %v613 = vadd.f32 0.0, %v612
    %v614 = vpop.f32.mrb[0].mxu0
    %v615 = vadd.f32 0.0, %v614
    %v616 = vpop.f32.mrb[0].mxu0
    %v617 = vadd.f32 0.0, %v616
    %v618 = vpop.f32.mrb[0].mxu0
    %v619 = vadd.f32 0.0, %v618
    %620 = vdwg.mxu0
    %v621 = vsub.f32 0.0, %v484
    %v622 = vsub.f32 0.0, %v486
    %v623 = vsub.f32 0.0, %v527
    %v624 = vsub.f32 0.0, %v529
    %v625 = vsub.f32 0.0, %v488
    %v626 = vsub.f32 0.0, %v490
    %v627 = vsub.f32 0.0, %v531
    %v628 = vsub.f32 0.0, %v533
    %v629 = vmul.f32 %v621, 1.442695
    %v630 = vpow.pop %v629
    %v631 = vmul.f32 %v622, 1.442695
    %v632 = vpow.pop %v631
    %v633 = vmul.f32 %v623, 1.442695
    %v634 = vpow.pop %v633
    %v635 = vmul.f32 %v624, 1.442695
    %v636 = vpow.pop %v635
    %v637 = vmul.f32 %v625, 1.442695
    %v638 = vpow.pop %v637
    %v639 = vmul.f32 %v626, 1.442695
    %v640 = vpow.pop %v639
    %v641 = vmul.f32 %v627, 1.442695
    %v642 = vpow.pop %v641
    %v643 = vmul.f32 %v628, 1.442695
    %v644 = vpow.pop %v643
    %v645 = vadd.f32 %v630, 1.0
    %v646 = vadd.f32 %v632, 1.0
    %v647 = vadd.f32 %v634, 1.0
    %v648 = vadd.f32 %v636, 1.0
    %v649 = vadd.f32 %v638, 1.0
    %v650 = vadd.f32 %v640, 1.0
    %v651 = vadd.f32 %v642, 1.0
    %v652 = vadd.f32 %v644, 1.0
    %v653 = vrcp.pop %v645
    %v654 = vrcp.pop %v646
    %v655 = vrcp.pop %v647
    %v656 = vrcp.pop %v648
    %v657 = vrcp.pop %v649
    %v658 = vrcp.pop %v650
    %v659 = vrcp.pop %v651
    %v660 = vrcp.pop %v652
    %v661 = vmul.f32 %v484, %v653
    %v662 = vmul.f32 %v486, %v654
    %v663 = vmul.f32 %v527, %v655
    %v664 = vmul.f32 %v529, %v656
    %v665 = vmul.f32 %v488, %v657
    %v666 = vmul.f32 %v490, %v658
    %v667 = vmul.f32 %v531, %v659
    %v668 = vmul.f32 %v533, %v660
    %v669 = vmul.f32 %v661, %v570
    %v670 = vmul.f32 %v662, %v572
    %v671 = vmul.f32 %v663, %v613
    %v672 = vmul.f32 %v664, %v615
    %v673 = vmul.f32 %v665, %v574
    %v674 = vmul.f32 %v666, %v576
    %v675 = vmul.f32 %v667, %v617
    %v676 = vmul.f32 %v668, %v619
    %v677 = vpack.c.bf16 %v673, %v669
    %v678 = vpack.c.bf16 %v674, %v670
    %v679 = vpack.c.bf16 %v675, %v671
    %v680 = vpack.c.bf16 %v676, %v672
    %v681 = vld [vmem:[#allocation7] sm:$0xf]
    %v682 = vld [vmem:[#allocation7 + $0x4] sm:$0xf]
    %v683 = vld [vmem:[#allocation7 + $0x8] sm:$0xf]
    %v684 = vld [vmem:[#allocation7 + $0xc] sm:$0xf]
    %v685 = vld [vmem:[#allocation7 + $0x10] sm:$0xf]
    %v686 = vld [vmem:[#allocation7 + $0x14] sm:$0xf]
    %v687 = vld [vmem:[#allocation7 + $0x18] sm:$0xf]
    %v688 = vld [vmem:[#allocation7 + $0x1c] sm:$0xf]
    %v689 = vld [vmem:[#allocation7 + $0x20] sm:$0xf]
    %v690 = vld [vmem:[#allocation7 + $0x24] sm:$0xf]
    %v691 = vld [vmem:[#allocation7 + $0x28] sm:$0xf]
    %v692 = vld [vmem:[#allocation7 + $0x2c] sm:$0xf]
    %v693 = vld [vmem:[#allocation7 + $0x30] sm:$0xf]
    %v694 = vld [vmem:[#allocation7 + $0x34] sm:$0xf]
    %v695 = vld [vmem:[#allocation7 + $0x38] sm:$0xf]
    %v696 = vld [vmem:[#allocation7 + $0x3c] sm:$0xf]
    %v697 = vld [vmem:[#allocation7 + $0x40] sm:$0xf]
    %v698 = vld [vmem:[#allocation7 + $0x44] sm:$0xf]
    %v699 = vld [vmem:[#allocation7 + $0x48] sm:$0xf]
    %v700 = vld [vmem:[#allocation7 + $0x4c] sm:$0xf]
    %v701 = vld [vmem:[#allocation7 + $0x50] sm:$0xf]
    %v702 = vld [vmem:[#allocation7 + $0x54] sm:$0xf]
    %v703 = vld [vmem:[#allocation7 + $0x58] sm:$0xf]
    %v704 = vld [vmem:[#allocation7 + $0x5c] sm:$0xf]
    %v705 = vld [vmem:[#allocation7 + $0x60] sm:$0xf]
    %v706 = vld [vmem:[#allocation7 + $0x64] sm:$0xf]
    %v707 = vld [vmem:[#allocation7 + $0x68] sm:$0xf]
    %v708 = vld [vmem:[#allocation7 + $0x6c] sm:$0xf]
    %v709 = vld [vmem:[#allocation7 + $0x70] sm:$0xf]
    %v710 = vld [vmem:[#allocation7 + $0x74] sm:$0xf]
    %v711 = vld [vmem:[#allocation7 + $0x78] sm:$0xf]
    %v712 = vld [vmem:[#allocation7 + $0x7c] sm:$0xf]
    %v713 = vld [vmem:[#allocation7 + $0x80] sm:$0xf]
    %v714 = vld [vmem:[#allocation7 + $0x84] sm:$0xf]
    %v715 = vld [vmem:[#allocation7 + $0x88] sm:$0xf]
    %v716 = vld [vmem:[#allocation7 + $0x8c] sm:$0xf]
    %v717 = vld [vmem:[#allocation7 + $0x90] sm:$0xf]
    %v718 = vld [vmem:[#allocation7 + $0x94] sm:$0xf]
    %v719 = vld [vmem:[#allocation7 + $0x98] sm:$0xf]
    %v720 = vld [vmem:[#allocation7 + $0x9c] sm:$0xf]
    %v721 = vld [vmem:[#allocation7 + $0xa0] sm:$0xf]
    %v722 = vld [vmem:[#allocation7 + $0xa4] sm:$0xf]
    %v723 = vld [vmem:[#allocation7 + $0xa8] sm:$0xf]
    %v724 = vld [vmem:[#allocation7 + $0xac] sm:$0xf]
    %v725 = vld [vmem:[#allocation7 + $0xb0] sm:$0xf]
    %v726 = vld [vmem:[#allocation7 + $0xb4] sm:$0xf]
    %v727 = vld [vmem:[#allocation7 + $0xb8] sm:$0xf]
    %v728 = vld [vmem:[#allocation7 + $0xbc] sm:$0xf]
    %v729 = vld [vmem:[#allocation7 + $0xc0] sm:$0xf]
    %v730 = vld [vmem:[#allocation7 + $0xc4] sm:$0xf]
    %v731 = vld [vmem:[#allocation7 + $0xc8] sm:$0xf]
    %v732 = vld [vmem:[#allocation7 + $0xcc] sm:$0xf]
    %v733 = vld [vmem:[#allocation7 + $0xd0] sm:$0xf]
    %v734 = vld [vmem:[#allocation7 + $0xd4] sm:$0xf]
    %v735 = vld [vmem:[#allocation7 + $0xd8] sm:$0xf]
    %v736 = vld [vmem:[#allocation7 + $0xdc] sm:$0xf]
    %v737 = vld [vmem:[#allocation7 + $0xe0] sm:$0xf]
    %v738 = vld [vmem:[#allocation7 + $0xe4] sm:$0xf]
    %v739 = vld [vmem:[#allocation7 + $0xe8] sm:$0xf]
    %v740 = vld [vmem:[#allocation7 + $0xec] sm:$0xf]
    %v741 = vld [vmem:[#allocation7 + $0xf0] sm:$0xf]
    %v742 = vld [vmem:[#allocation7 + $0xf4] sm:$0xf]
    %v743 = vld [vmem:[#allocation7 + $0xf8] sm:$0xf]
    %v744 = vld [vmem:[#allocation7 + $0xfc] sm:$0xf]
    %v809 = vunpack.c.l.b16 %v681
    %v810 = vunpack.c.l.b16 %v682
    %v811 = vunpack.c.l.b16 %v683
    %v812 = vunpack.c.l.b16 %v684
    %v813 = vunpack.c.l.b16 %v685
    %v814 = vunpack.c.l.b16 %v686
    %v815 = vunpack.c.l.b16 %v687
    %v816 = vunpack.c.l.b16 %v688
    %v817 = vunpack.c.l.b16 %v689
    %v818 = vunpack.c.l.b16 %v690
    %v819 = vunpack.c.l.b16 %v691
    %v820 = vunpack.c.l.b16 %v692
    %v821 = vunpack.c.l.b16 %v693
    %v822 = vunpack.c.l.b16 %v694
    %v823 = vunpack.c.l.b16 %v695
    %v824 = vunpack.c.l.b16 %v696
    %v825 = vunpack.c.l.b16 %v697
    %v826 = vunpack.c.l.b16 %v698
    %v827 = vunpack.c.l.b16 %v699
    %v828 = vunpack.c.l.b16 %v700
    %v829 = vunpack.c.l.b16 %v701
    %v830 = vunpack.c.l.b16 %v702
    %v831 = vunpack.c.l.b16 %v703
    %v832 = vunpack.c.l.b16 %v704
    %v833 = vunpack.c.l.b16 %v705
    %v834 = vunpack.c.l.b16 %v706
    %v835 = vunpack.c.l.b16 %v707
    %v836 = vunpack.c.l.b16 %v708
    %v837 = vunpack.c.l.b16 %v709
    %v838 = vunpack.c.l.b16 %v710
    %v839 = vunpack.c.l.b16 %v711
    %v840 = vunpack.c.l.b16 %v712
    %v841 = vunpack.c.l.b16 %v713
    %v842 = vunpack.c.l.b16 %v714
    %v843 = vunpack.c.l.b16 %v715
    %v844 = vunpack.c.l.b16 %v716
    %v845 = vunpack.c.l.b16 %v717
    %v846 = vunpack.c.l.b16 %v718
    %v847 = vunpack.c.l.b16 %v719
    %v848 = vunpack.c.l.b16 %v720
    %v849 = vunpack.c.l.b16 %v721
    %v850 = vunpack.c.l.b16 %v722
    %v851 = vunpack.c.l.b16 %v723
    %v852 = vunpack.c.l.b16 %v724
    %v853 = vunpack.c.l.b16 %v725
    %v854 = vunpack.c.l.b16 %v726
    %v855 = vunpack.c.l.b16 %v727
    %v856 = vunpack.c.l.b16 %v728
    %v857 = vunpack.c.l.b16 %v729
    %v858 = vunpack.c.l.b16 %v730
    %v859 = vunpack.c.l.b16 %v731
    %v860 = vunpack.c.l.b16 %v732
    %v861 = vunpack.c.l.b16 %v733
    %v862 = vunpack.c.l.b16 %v734
    %v863 = vunpack.c.l.b16 %v735
    %v864 = vunpack.c.l.b16 %v736
    %v865 = vunpack.c.l.b16 %v737
    %v866 = vunpack.c.l.b16 %v738
    %v867 = vunpack.c.l.b16 %v739
    %v868 = vunpack.c.l.b16 %v740
    %v869 = vunpack.c.l.b16 %v741
    %v870 = vunpack.c.l.b16 %v742
    %v871 = vunpack.c.l.b16 %v743
    %v872 = vunpack.c.l.b16 %v744
    %v873 = vpack.c.b16 %v810, %v809
    %v874 = vpack.c.b16 %v812, %v811
    %v875 = vpack.c.b16 %v814, %v813
    %v876 = vpack.c.b16 %v816, %v815
    %v877 = vpack.c.b16 %v818, %v817
    %v878 = vpack.c.b16 %v820, %v819
    %v879 = vpack.c.b16 %v822, %v821
    %v880 = vpack.c.b16 %v824, %v823
    %v881 = vpack.c.b16 %v826, %v825
    %v882 = vpack.c.b16 %v828, %v827
    %v883 = vpack.c.b16 %v830, %v829
    %v884 = vpack.c.b16 %v832, %v831
    %v885 = vpack.c.b16 %v834, %v833
    %v886 = vpack.c.b16 %v836, %v835
    %v887 = vpack.c.b16 %v838, %v837
    %v888 = vpack.c.b16 %v840, %v839
    %v889 = vpack.c.b16 %v842, %v841
    %v890 = vpack.c.b16 %v844, %v843
    %v891 = vpack.c.b16 %v846, %v845
    %v892 = vpack.c.b16 %v848, %v847
    %v893 = vpack.c.b16 %v850, %v849
    %v894 = vpack.c.b16 %v852, %v851
    %v895 = vpack.c.b16 %v854, %v853
    %v896 = vpack.c.b16 %v856, %v855
    %v897 = vpack.c.b16 %v858, %v857
    %v898 = vpack.c.b16 %v860, %v859
    %v899 = vpack.c.b16 %v862, %v861
    %v900 = vpack.c.b16 %v864, %v863
    %v901 = vpack.c.b16 %v866, %v865
    %v902 = vpack.c.b16 %v868, %v867
    %v903 = vpack.c.b16 %v870, %v869
    %v904 = vpack.c.b16 %v872, %v871
    %937 = vmatprep.subr.bf16.mxu0 0
    %938 = vmatpush1.bf16.msra.mxu0 %v873
    %939 = vmatprep.subr.bf16.mxu0 0
    %940 = vmatpush1.bf16.msra.mxu0 %v874
    %941 = vmatprep.subr.bf16.mxu0 0
    %942 = vmatpush1.bf16.msra.mxu0 %v875
    %943 = vmatprep.subr.bf16.mxu0 0
    %944 = vmatpush1.bf16.msra.mxu0 %v876
    %945 = vmatprep.subr.bf16.mxu0 0
    %946 = vmatpush1.bf16.msra.mxu0 %v877
    %947 = vmatprep.subr.bf16.mxu0 0
    %948 = vmatpush1.bf16.msra.mxu0 %v878
    %949 = vmatprep.subr.bf16.mxu0 0
    %950 = vmatpush1.bf16.msra.mxu0 %v879
    %951 = vmatprep.subr.bf16.mxu0 0
    %952 = vmatpush1.bf16.msra.mxu0 %v880
    %953 = vmatprep.subr.bf16.mxu0 0
    %954 = vmatpush1.bf16.msra.mxu0 %v881
    %955 = vmatprep.subr.bf16.mxu0 0
    %956 = vmatpush1.bf16.msra.mxu0 %v882
    %957 = vmatprep.subr.bf16.mxu0 0
    %958 = vmatpush1.bf16.msra.mxu0 %v883
    %959 = vmatprep.subr.bf16.mxu0 0
    %960 = vmatpush1.bf16.msra.mxu0 %v884
    %961 = vmatprep.subr.bf16.mxu0 0
    %962 = vmatpush1.bf16.msra.mxu0 %v885
    %963 = vmatprep.subr.bf16.mxu0 0
    %964 = vmatpush1.bf16.msra.mxu0 %v886
    %965 = vmatprep.subr.bf16.mxu0 0
    %966 = vmatpush1.bf16.msra.mxu0 %v887
    %967 = vmatprep.subr.bf16.mxu0 0
    %968 = vmatpush1.bf16.msra.mxu0 %v888
    %969 = vmatprep.mubr.bf16.mxu0 %v678
    %970 = vmatmul.mubr.bf16.gmra.mrb[0].mxu0 %v677
    %v971 = vpop.f32.mrb[0].mxu0
    %v972 = vadd.f32 0.0, %v971
    %v973 = vpop.f32.mrb[0].mxu0
    %v974 = vpop.f32.mrb[0].mxu0
    %v975 = vadd.f32 0.0, %v974
    %v976 = vpop.f32.mrb[0].mxu0
    %977 = vdwg.mxu0
    %978 = vmatprep.subr.bf16.mxu0 0
    %979 = vmatpush1.bf16.msra.mxu0 %v889
    %980 = vmatprep.subr.bf16.mxu0 0
    %981 = vmatpush1.bf16.msra.mxu0 %v890
    %982 = vmatprep.subr.bf16.mxu0 0
    %983 = vmatpush1.bf16.msra.mxu0 %v891
    %984 = vmatprep.subr.bf16.mxu0 0
    %985 = vmatpush1.bf16.msra.mxu0 %v892
    %986 = vmatprep.subr.bf16.mxu0 0
    %987 = vmatpush1.bf16.msra.mxu0 %v893
    %988 = vmatprep.subr.bf16.mxu0 0
    %989 = vmatpush1.bf16.msra.mxu0 %v894
    %990 = vmatprep.subr.bf16.mxu0 0
    %991 = vmatpush1.bf16.msra.mxu0 %v895
    %992 = vmatprep.subr.bf16.mxu0 0
    %993 = vmatpush1.bf16.msra.mxu0 %v896
    %994 = vmatprep.subr.bf16.mxu0 0
    %995 = vmatpush1.bf16.msra.mxu0 %v897
    %996 = vmatprep.subr.bf16.mxu0 0
    %997 = vmatpush1.bf16.msra.mxu0 %v898
    %998 = vmatprep.subr.bf16.mxu0 0
    %999 = vmatpush1.bf16.msra.mxu0 %v899
    %1000 = vmatprep.subr.bf16.mxu0 0
    %1001 = vmatpush1.bf16.msra.mxu0 %v900
    %1002 = vmatprep.subr.bf16.mxu0 0
    %1003 = vmatpush1.bf16.msra.mxu0 %v901
    %1004 = vmatprep.subr.bf16.mxu0 0
    %1005 = vmatpush1.bf16.msra.mxu0 %v902
    %1006 = vmatprep.subr.bf16.mxu0 0
    %1007 = vmatpush1.bf16.msra.mxu0 %v903
    %1008 = vmatprep.subr.bf16.mxu0 0
    %1009 = vmatpush1.bf16.msra.mxu0 %v904
    %1010 = vmatprep.mubr.bf16.mxu0 %v680
    %1011 = vmatmul.mubr.bf16.gmra.mrb[0].mxu0 %v679
    %v1012 = vpop.f32.mrb[0].mxu0
    %v1013 = vadd.f32 %v972, %v1012
    %v1014 = vpop.f32.mrb[0].mxu0
    %v1015 = vpop.f32.mrb[0].mxu0
    %v1016 = vadd.f32 %v975, %v1015
    %v1017 = vpop.f32.mrb[0].mxu0
    %1018 = vdwg.mxu0
    %v1019 = vpack.c.bf16 %v1016, %v1013
    %v1021 = vunpack.c.l.b16 %v1019
    %v1022 = vunpack.c.h.b16 %v1019
    %v1023 = vpack.c.b16 %v1021, %v1021
    %v1024 = vpack.c.b16 %v1022, %v1022
    %1027 = vst [vmem:[#allocation8] sm:$0xf] %v1023
    %1028 = vst [vmem:[#allocation8 + $0x4] sm:$0xf] %v1024
    // Predicated region
    $region26: #{tpu_custom_call.1} parent=1 // pred_check
      _
    $region27: #{tpu_custom_call.1} parent=1 // pred_check_branch
      %1030 = sbr.rel (0) target = $region29
    $region28: #{tpu_custom_call.1} parent=1 // pred_region
      %s1032 = ssub.s32 128, 128
      %1033 = vsyncadd [#allocation4], %s1032
      %s1034 = sshll.u32 [#allocation8], 4
      %s1035 = int_to_ptr.vmem [resolvable:$true] %s1034
      %1040 = dma.vmem_to_hbm [thread:$0]  %s1035, 128, %s3, [#allocation4], 64, 64, 4
    $region29: #{tpu_custom_call.1} parent=1 // pred_fallthru
      _
    // Predicated region
    $region30: #{tpu_custom_call.1} parent=1 // pred_check
      _
    $region31: #{tpu_custom_call.1} parent=1 // pred_check_branch
      %1042 = sbr.rel (0) target = $region33
    $region32: #{tpu_custom_call.1} parent=1 // pred_region
      %1043 = dma.done [#allocation4], 128
    $region33: #{tpu_custom_call.1} parent=1 // pred_fallthru
      _
    %1044 = vsyncpa [#allocation3], 1
    %1045 = vsyncpa [#allocation6], 1
    %1046 = vsyncpa [#allocation4], 1

</llo_original>
